<compile_context>
chip_gen: v7x
topology: tpu7x:2x2x1
jax: 0.10.0
libtpu: 0.0.40
codegen_flags: <defaults>
</compile_context>

<pallas_src>
import jax
import jax.numpy as jnp
from jax.experimental import pallas as pl
from jax.experimental.pallas import tpu as pltpu


def _mish(x):
    # mish(x) = x * tanh(softplus(x)) = x * t/(t+2), t = e*(e+2), e = exp(x).
    # exp is clamped so t never overflows; for x >= 20, t/(t+2) == 1.0 in f32,
    # so the clamp is exact. One EUP transcendental + one divide per Mish.
    e = jnp.exp(jnp.minimum(x, 20.0))
    t = e * (e + 2.0)
    return x * (t / (t + 2.0))


def _round_up(v, m):
    return (v + m - 1) // m * m


def conv2d_mish_mish(x_nchw, weight, bias):
    """x_nchw: (N, Cin, H, W); weight: (Cout, Cin, KH, KW); bias: (Cout,). Returns NCHW."""
    N, Cin, H, W = x_nchw.shape
    Cout, _, KH, KW = weight.shape
    OH, OW = H - KH + 1, W - KW + 1
    P = OH * OW            # flattened output spatial per batch element
    L = N * P              # lane-dense output axis (batch folded in)
    K = KH * KW * Cin      # im2col contraction size

    K_pad = _round_up(K, 8)       # sublane alignment for patches
    L_pad = _round_up(L, 128)     # lane alignment -> unmasked vst on output

    # ---------------- wrapper-side (XLA) layout plumbing ----------------
    # patches[k, l]  with  k = (kh*KW + kw)*Cin + ci ,  l = n*P + oh*OW + ow
    taps = jnp.stack(
        [x_nchw[:, :, kh:kh + OH, kw:kw + OW]
         for kh in range(KH) for kw in range(KW)],
        axis=0,
    )                                                   # (KH*KW, N, Cin, OH, OW)
    patches = jnp.transpose(taps, (0, 2, 1, 3, 4)).reshape(K, L)
    patches = jnp.pad(patches, ((0, K_pad - K), (0, L_pad - L)))

    # Weight relayout (Cout, Cin, KH, KW) -> (Cout, K) with K ordered (kh, kw, ci)
    w_mat = jnp.transpose(weight, (0, 2, 3, 1)).reshape(Cout, K)
    w_mat = jnp.pad(w_mat, ((0, 0), (0, K_pad - K)))
    b_col = bias.reshape(Cout, 1)

    # ---------------- the fused kernel ----------------
    def kernel(p_ref, w_ref, b_ref, o_ref):
        acc = jax.lax.dot_general(
            w_ref[...], p_ref[...],
            dimension_numbers=(((1,), (0,)), ((), ())),
            preferred_element_type=jnp.float32,
        )                                               # (Cout, L_pad): one MXU push
        y = _mish(_mish(acc + b_ref[...]))              # fused bias + double-Mish
        o_ref[...] = y.astype(o_ref.dtype)              # lane-dense unmasked store

    out_flat = pl.pallas_call(
        kernel,
        out_shape=jax.ShapeDtypeStruct((Cout, L_pad), x_nchw.dtype),
        # Whole-problem blocks, single invocation; everything fits VMEM easily.
        in_specs=[
            pl.BlockSpec(memory_space=pltpu.MemorySpace.VMEM),
            pl.BlockSpec(memory_space=pltpu.MemorySpace.VMEM),
            pl.BlockSpec(memory_space=pltpu.MemorySpace.VMEM),
        ],
        out_specs=pl.BlockSpec(memory_space=pltpu.MemorySpace.VMEM),
    )(patches, w_mat, b_col)

    # Strip lane padding, un-fold batch, tiny transpose back to NCHW (in XLA).
    out = out_flat[:, :L].reshape(Cout, N, OH, OW)
    return jnp.transpose(out, (1, 0, 2, 3))


if __name__ == "__main__":
    key = jax.random.PRNGKey(0)
    k_x, k_w, k_b = jax.random.split(key, 3)

    # Small shapes consistent with the module: batch=2, in_ch=4, out_ch=8, k=3, spatial=16
    N, Cin, H, W = 2, 4, 16, 16
    Cout, Ksz = 8, 3

    x = jax.random.normal(k_x, (N, Cin, H, W), dtype=jnp.float32)

    # Deterministic PyTorch-style Conv2d init: U(-bound, bound), bound = 1/sqrt(Cin*K*K)
    fan_in = Cin * Ksz * Ksz
    bound = 1.0 / (fan_in ** 0.5)
    weight = jax.random.uniform(k_w, (Cout, Cin, Ksz, Ksz), jnp.float32, -bound, bound)
    bias = jax.random.uniform(k_b, (Cout,), jnp.float32, -bound, bound)

    run = jax.jit(conv2d_mish_mish)
    out = jax.block_until_ready(run(x, weight, bias))

    # Pure-JAX reference: conv + bias + double Mish (original formulation).
    ref_conv = jax.lax.conv_general_dilated(
        x, weight, window_strides=(1, 1), padding="VALID",
        dimension_numbers=("NCHW", "OIHW", "NCHW"),
    ) + bias.reshape(1, Cout, 1, 1)
    mish_ref = lambda v: v * jnp.tanh(jnp.log1p(jnp.exp(v)))
    ref = mish_ref(mish_ref(ref_conv))

    assert out.shape == (N, Cout, H - Ksz + 1, W - Ksz + 1)
    assert jnp.allclose(out, ref, atol=1e-4, rtol=1e-4), "mismatch vs reference"

    print("KERNEL_OK")
</pallas_src>

<mosaic_0001>
module attributes {stable_mosaic.version = 11 : i64} {
  func.func @kernel(%arg0: memref<40x512xf32, #tpu.memory_space<vmem>>, %arg1: memref<8x40xf32, #tpu.memory_space<vmem>>, %arg2: memref<8x1xf32, #tpu.memory_space<vmem>>, %arg3: memref<8x512xf32, #tpu.memory_space<vmem>>) attributes {dimension_semantics = [], scalar_prefetch = 0 : i64, scratch_operands = 0 : i64, tpu.core_type = #tpu.core_type<tc>} {
    %c0 = arith.constant 0 : index
    %c0_0 = arith.constant 0 : index
    %0 = vector.load %arg1[%c0, %c0_0] : memref<8x40xf32, #tpu.memory_space<vmem>>, vector<8x40xf32>
    %c0_1 = arith.constant 0 : index
    %c0_2 = arith.constant 0 : index
    %1 = vector.load %arg0[%c0_1, %c0_2] : memref<40x512xf32, #tpu.memory_space<vmem>>, vector<40x512xf32>
    %cst = arith.constant dense<0.000000e+00> : vector<8x512xf32>
    %2 = tpu.matmul %0, %1, %cst {dimension_numbers = #tpu.dot_dimension_numbers<[1], [0], [0], [1], [0, 0, 1, 1], [], []>} : vector<8x40xf32>, vector<40x512xf32>, vector<8x512xf32> -> vector<8x512xf32>
    %c0_3 = arith.constant 0 : index
    %c0_4 = arith.constant 0 : index
    %3 = vector.load %arg2[%c0_3, %c0_4] : memref<8x1xf32, #tpu.memory_space<vmem>>, vector<8x1xf32>
    %4 = vector.broadcast %3 : vector<8x1xf32> to vector<8x512xf32>
    %5 = arith.addf %2, %4 : vector<8x512xf32>
    %cst_5 = arith.constant 2.000000e+01 : f32
    %6 = vector.broadcast %cst_5 : f32 to vector<8x512xf32>
    %7 = arith.minimumf %5, %6 : vector<8x512xf32>
    %8 = math.exp %7 : vector<8x512xf32>
    %cst_6 = arith.constant 2.000000e+00 : f32
    %9 = vector.broadcast %cst_6 : f32 to vector<8x512xf32>
    %10 = arith.addf %8, %9 : vector<8x512xf32>
    %11 = arith.mulf %8, %10 : vector<8x512xf32>
    %cst_7 = arith.constant 2.000000e+00 : f32
    %12 = vector.broadcast %cst_7 : f32 to vector<8x512xf32>
    %13 = arith.addf %11, %12 : vector<8x512xf32>
    %14 = arith.divf %11, %13 : vector<8x512xf32>
    %15 = arith.mulf %5, %14 : vector<8x512xf32>
    %cst_8 = arith.constant 2.000000e+01 : f32
    %16 = vector.broadcast %cst_8 : f32 to vector<8x512xf32>
    %17 = arith.minimumf %15, %16 : vector<8x512xf32>
    %18 = math.exp %17 : vector<8x512xf32>
    %cst_9 = arith.constant 2.000000e+00 : f32
    %19 = vector.broadcast %cst_9 : f32 to vector<8x512xf32>
    %20 = arith.addf %18, %19 : vector<8x512xf32>
    %21 = arith.mulf %18, %20 : vector<8x512xf32>
    %cst_10 = arith.constant 2.000000e+00 : f32
    %22 = vector.broadcast %cst_10 : f32 to vector<8x512xf32>
    %23 = arith.addf %21, %22 : vector<8x512xf32>
    %24 = arith.divf %21, %23 : vector<8x512xf32>
    %25 = arith.mulf %15, %24 : vector<8x512xf32>
    %c0_11 = arith.constant 0 : index
    %c0_12 = arith.constant 0 : index
    %26 = vector.load %arg3[%c0_11, %c0_12] : memref<8x512xf32, #tpu.memory_space<vmem>>, vector<8x512xf32>
    tpu.vector_store %arg3[%c0_11, %c0_12], %25 {strides = array<i32>} : memref<8x512xf32, #tpu.memory_space<vmem>>, vector<8x512xf32>,
    return
  }
}

</mosaic_0001>

<llo_original>
// kernel: conv2d_mish_mish.1
$region0: #{conv2d_mish_mish.1}
  #allocation0 [shape = 'u32[]', space=smem, size = 0x4, offset = 0x4, fixed_abs, tag = 'smem constant byte address 0x4 - core index']
  #allocation1 [shape = 'u32[144,128]{1,0:T(1,128)}', space=vmem, size = 0x12000, scoped, tag = 'internal scratch']
  %s0 = inlined_call_operand.vmem [shape: f32[40,512], index: 0, kind: input, shape index: {}]
  %s1 = inlined_call_operand.vmem [shape: f32[8,40], index: 1, kind: input, shape index: {}]
  %s2 = inlined_call_operand.vmem [shape: f32[8,1], index: 2, kind: input, shape index: {}]
  %s3 = inlined_call_operand.vmem [shape: f32[8,512], index: 3, kind: output, shape index: {}]
  %s4 = sld [smem:[#allocation0]]
  $region22: #{conv2d_mish_mish.1} parent=0
    _
  %s6 = ssub.s32 1, %s4
  %s7 = scalar_select 0, %s6, %s4
  // Predicated region
  $region2: #{conv2d_mish_mish.1} parent=0 // pred_check
    _
  $region3: #{conv2d_mish_mish.1} parent=0 // pred_check_branch
    %9 = sbr.rel (0) target = $region5
  $region4: #{conv2d_mish_mish.1} parent=0 // pred_region
    _
  $region5: #{conv2d_mish_mish.1} parent=0 // pred_fallthru
    _
  // Predicated region
  $region6: #{conv2d_mish_mish.1} parent=0 // pred_check
    _
  $region7: #{conv2d_mish_mish.1} parent=0 // pred_check_branch
    %11 = sbr.rel (0) target = $region9
  $region8: #{conv2d_mish_mish.1} parent=0 // pred_region
    _
  $region9: #{conv2d_mish_mish.1} parent=0 // pred_fallthru
    _
  // Predicated region
  $region10: #{conv2d_mish_mish.1} parent=0 // pred_check
    _
  $region11: #{conv2d_mish_mish.1} parent=0 // pred_check_branch
    %13 = sbr.rel (0) target = $region13
  $region12: #{conv2d_mish_mish.1} parent=0 // pred_region
    _
  $region13: #{conv2d_mish_mish.1} parent=0 // pred_fallthru
    _
  %v14 = vld [vmem:[%s1] sm:$0xff]
  %v15 = vld [vmem:[%s0] sm:$0xff]
  %v16 = vld [vmem:[%s0 + $0x8] sm:$0xff]
  %v17 = vld [vmem:[%s0 + $0x10] sm:$0xff]
  %v18 = vld [vmem:[%s0 + $0x18] sm:$0xff]
  %v19 = vld [vmem:[%s0 + $0x20] sm:$0xff]
  %v20 = vld [vmem:[%s0 + $0x28] sm:$0xff]
  %v21 = vld [vmem:[%s0 + $0x30] sm:$0xff]
  %v22 = vld [vmem:[%s0 + $0x38] sm:$0xff]
  %v23 = vld [vmem:[%s0 + $0x40] sm:$0xff]
  %v24 = vld [vmem:[%s0 + $0x48] sm:$0xff]
  %v25 = vld [vmem:[%s0 + $0x50] sm:$0xff]
  %v26 = vld [vmem:[%s0 + $0x58] sm:$0xff]
  %v27 = vld [vmem:[%s0 + $0x60] sm:$0xff]
  %v28 = vld [vmem:[%s0 + $0x68] sm:$0xff]
  %v29 = vld [vmem:[%s0 + $0x70] sm:$0xff]
  %v30 = vld [vmem:[%s0 + $0x78] sm:$0xff]
  %v31 = vld [vmem:[%s0 + $0x80] sm:$0xff]
  %v32 = vld [vmem:[%s0 + $0x88] sm:$0xff]
  %v33 = vld [vmem:[%s0 + $0x90] sm:$0xff]
  %v34 = vld [vmem:[%s0 + $0x98] sm:$0xff]
  %v35 = vld [vmem:[%s2] sm:$0xff]
  %37 = vset.pattern.permute.xlu0 0
  %38 = vperm.xlu0 %37, %v35
  %v39 = vpop.permute.xlu0 %38
  %vm41 = vcmask 326656
  %v43 = vsel %vm41, %v14, 0
  %45 = vmatprep.subr.mxu0 %v16
  %46 = vmatpush1.msra.mxu0 %v15
  %47 = vmatprep.subr.mxu0 %v20
  %48 = vmatpush1.msra.mxu0 %v19
  %49 = vmatprep.subr.mxu0 %v24
  %50 = vmatpush1.msra.mxu0 %v23
  %51 = vmatprep.subr.mxu0 %v28
  %52 = vmatpush1.msra.mxu0 %v27
  %53 = vmatprep.subr.mxu0 %v32
  %54 = vmatpush1.msra.mxu0 %v31
  %55 = vmatprep.subr.mxu0 0.0
  %56 = vmatpush1.msra.mxu0 0.0
  %57 = vmatprep.subr.mxu0 0.0
  %58 = vmatpush1.msra.mxu0 0.0
  %59 = vmatprep.subr.mxu0 0.0
  %60 = vmatpush1.msra.mxu0 0.0
  %61 = vmatprep.subr.mxu0 0.0
  %62 = vmatpush1.msra.mxu0 0.0
  %63 = vmatprep.subr.mxu0 0.0
  %64 = vmatpush1.msra.mxu0 0.0
  %65 = vmatprep.subr.mxu0 0.0
  %66 = vmatpush1.msra.mxu0 0.0
  %67 = vmatprep.subr.mxu0 0.0
  %68 = vmatpush1.msra.mxu0 0.0
  %69 = vmatprep.subr.mxu0 0.0
  %70 = vmatpush1.msra.mxu0 0.0
  %71 = vmatprep.subr.mxu0 0.0
  %72 = vmatpush1.msra.mxu0 0.0
  %73 = vmatprep.subr.mxu0 0.0
  %74 = vmatpush1.msra.mxu0 0.0
  %75 = vmatprep.subr.mxu0 0.0
  %76 = vmatpush1.msra.mxu0 0.0
  %77 = vmatprep.subr.mxu0 0.0
  %78 = vmatpush1.msra.mxu0 0.0
  %79 = vmatprep.subr.mxu0 0.0
  %80 = vmatpush1.msra.mxu0 0.0
  %81 = vmatprep.subr.mxu0 0.0
  %82 = vmatpush1.msra.mxu0 0.0
  %83 = vmatprep.subr.mxu0 0.0
  %84 = vmatpush1.msra.mxu0 0.0
  %85 = vmatprep.subr.mxu0 0.0
  %86 = vmatpush1.msra.mxu0 0.0
  %87 = vmatprep.subr.mxu0 0.0
  %88 = vmatpush1.msra.mxu0 0.0
  %89 = vmatprep.subr.mxu0 0.0
  %90 = vmatpush1.msra.mxu0 0.0
  %91 = vmatprep.subr.mxu0 0.0
  %92 = vmatpush1.msra.mxu0 0.0
  %93 = vmatprep.subr.mxu0 0.0
  %94 = vmatpush1.msra.mxu0 0.0
  %95 = vmatprep.subr.mxu0 0.0
  %96 = vmatpush1.msra.mxu0 0.0
  %97 = vmatprep.subr.mxu0 0.0
  %98 = vmatpush1.msra.mxu0 0.0
  %99 = vmatprep.subr.mxu0 0.0
  %100 = vmatpush1.msra.mxu0 0.0
  %101 = vmatprep.subr.mxu0 0.0
  %102 = vmatpush1.msra.mxu0 0.0
  %103 = vmatprep.subr.mxu0 0.0
  %104 = vmatpush1.msra.mxu0 0.0
  %105 = vmatprep.subr.mxu0 0.0
  %106 = vmatpush1.msra.mxu0 0.0
  %107 = vmatprep.subr.mxu0 0.0
  %108 = vmatpush1.msra.mxu0 0.0
  %109 = vmatprep.mubr.f32.mxu0 0.0
  %110 = vmatmul.mubr.f32.gmra.mrb[0].mxu0 %v43
  %v111 = vpop.f32.mrb[0].mxu0
  %v112 = vadd.f32 %v39, %v111
  %v113 = vpop.f32.mrb[0].mxu0
  %v114 = vadd.f32 %v39, %v113
  %115 = vdwg.mxu0
  %116 = vmatprep.subr.mxu0 %v18
  %117 = vmatpush1.msra.mxu0 %v17
  %118 = vmatprep.subr.mxu0 %v22
  %119 = vmatpush1.msra.mxu0 %v21
  %120 = vmatprep.subr.mxu0 %v26
  %121 = vmatpush1.msra.mxu0 %v25
  %122 = vmatprep.subr.mxu0 %v30
  %123 = vmatpush1.msra.mxu0 %v29
  %124 = vmatprep.subr.mxu0 %v34
  %125 = vmatpush1.msra.mxu0 %v33
  %126 = vmatprep.subr.mxu0 0.0
  %127 = vmatpush1.msra.mxu0 0.0
  %128 = vmatprep.subr.mxu0 0.0
  %129 = vmatpush1.msra.mxu0 0.0
  %130 = vmatprep.subr.mxu0 0.0
  %131 = vmatpush1.msra.mxu0 0.0
  %132 = vmatprep.subr.mxu0 0.0
  %133 = vmatpush1.msra.mxu0 0.0
  %134 = vmatprep.subr.mxu0 0.0
  %135 = vmatpush1.msra.mxu0 0.0
  %136 = vmatprep.subr.mxu0 0.0
  %137 = vmatpush1.msra.mxu0 0.0
  %138 = vmatprep.subr.mxu0 0.0
  %139 = vmatpush1.msra.mxu0 0.0
  %140 = vmatprep.subr.mxu0 0.0
  %141 = vmatpush1.msra.mxu0 0.0
  %142 = vmatprep.subr.mxu0 0.0
  %143 = vmatpush1.msra.mxu0 0.0
  %144 = vmatprep.subr.mxu0 0.0
  %145 = vmatpush1.msra.mxu0 0.0
  %146 = vmatprep.subr.mxu0 0.0
  %147 = vmatpush1.msra.mxu0 0.0
  %148 = vmatprep.subr.mxu0 0.0
  %149 = vmatpush1.msra.mxu0 0.0
  %150 = vmatprep.subr.mxu0 0.0
  %151 = vmatpush1.msra.mxu0 0.0
  %152 = vmatprep.subr.mxu0 0.0
  %153 = vmatpush1.msra.mxu0 0.0
  %154 = vmatprep.subr.mxu0 0.0
  %155 = vmatpush1.msra.mxu0 0.0
  %156 = vmatprep.subr.mxu0 0.0
  %157 = vmatpush1.msra.mxu0 0.0
  %158 = vmatprep.subr.mxu0 0.0
  %159 = vmatpush1.msra.mxu0 0.0
  %160 = vmatprep.subr.mxu0 0.0
  %161 = vmatpush1.msra.mxu0 0.0
  %162 = vmatprep.subr.mxu0 0.0
  %163 = vmatpush1.msra.mxu0 0.0
  %164 = vmatprep.subr.mxu0 0.0
  %165 = vmatpush1.msra.mxu0 0.0
  %166 = vmatprep.subr.mxu0 0.0
  %167 = vmatpush1.msra.mxu0 0.0
  %168 = vmatprep.subr.mxu0 0.0
  %169 = vmatpush1.msra.mxu0 0.0
  %170 = vmatprep.subr.mxu0 0.0
  %171 = vmatpush1.msra.mxu0 0.0
  %172 = vmatprep.subr.mxu0 0.0
  %173 = vmatpush1.msra.mxu0 0.0
  %174 = vmatprep.subr.mxu0 0.0
  %175 = vmatpush1.msra.mxu0 0.0
  %176 = vmatprep.subr.mxu0 0.0
  %177 = vmatpush1.msra.mxu0 0.0
  %178 = vmatprep.subr.mxu0 0.0
  %179 = vmatpush1.msra.mxu0 0.0
  %180 = vmatprep.mubr.f32.mxu0 0.0
  %181 = vmatmul.mubr.f32.gmra.mrb[0].mxu0 %v43
  %v182 = vpop.f32.mrb[0].mxu0
  %v183 = vadd.f32 %v39, %v182
  %v184 = vpop.f32.mrb[0].mxu0
  %v185 = vadd.f32 %v39, %v184
  %186 = vdwg.mxu0
  %v187 = vmin.f32 %v112, 20.0
  %v188 = vmin.f32 %v114, 20.0
  %v189 = vmin.f32 %v183, 20.0
  %v190 = vmin.f32 %v185, 20.0
  %v191 = vmul.f32 %v187, 1.442695
  %v192 = vpow.pop %v191
  %v193 = vmul.f32 %v188, 1.442695
  %v194 = vpow.pop %v193
  %v195 = vmul.f32 %v189, 1.442695
  %v196 = vpow.pop %v195
  %v197 = vmul.f32 %v190, 1.442695
  %v198 = vpow.pop %v197
  %v199 = vadd.f32 %v192, 2.0
  %v200 = vadd.f32 %v194, 2.0
  %v201 = vadd.f32 %v196, 2.0
  %v202 = vadd.f32 %v198, 2.0
  %v203 = vmul.f32 %v192, %v199
  %v204 = vmul.f32 %v194, %v200
  %v205 = vmul.f32 %v196, %v201
  %v206 = vmul.f32 %v198, %v202
  %v207 = vadd.f32 %v203, 2.0
  %v208 = vadd.f32 %v204, 2.0
  %v209 = vadd.f32 %v205, 2.0
  %v210 = vadd.f32 %v206, 2.0
  %v211 = vrcp.pop %v207
  %v212 = vmul.f32 %v203, %v211
  %v213 = vrcp.pop %v208
  %v214 = vmul.f32 %v204, %v213
  %v215 = vrcp.pop %v209
  %v216 = vmul.f32 %v205, %v215
  %v217 = vrcp.pop %v210
  %v218 = vmul.f32 %v206, %v217
  %v219 = vmul.f32 %v112, %v212
  %v220 = vmul.f32 %v114, %v214
  %v221 = vmul.f32 %v183, %v216
  %v222 = vmul.f32 %v185, %v218
  %v223 = vmin.f32 %v219, 20.0
  %v224 = vmin.f32 %v220, 20.0
  %v225 = vmin.f32 %v221, 20.0
  %v226 = vmin.f32 %v222, 20.0
  %v227 = vmul.f32 %v223, 1.442695
  %v228 = vpow.pop %v227
  %v229 = vmul.f32 %v224, 1.442695
  %v230 = vpow.pop %v229
  %v231 = vmul.f32 %v225, 1.442695
  %v232 = vpow.pop %v231
  %v233 = vmul.f32 %v226, 1.442695
  %v234 = vpow.pop %v233
  %v235 = vadd.f32 %v228, 2.0
  %v236 = vadd.f32 %v230, 2.0
  %v237 = vadd.f32 %v232, 2.0
  %v238 = vadd.f32 %v234, 2.0
  %v239 = vmul.f32 %v228, %v235
  %v240 = vmul.f32 %v230, %v236
  %v241 = vmul.f32 %v232, %v237
  %v242 = vmul.f32 %v234, %v238
  %v243 = vadd.f32 %v239, 2.0
  %v244 = vadd.f32 %v240, 2.0
  %v245 = vadd.f32 %v241, 2.0
  %v246 = vadd.f32 %v242, 2.0
  %v247 = vrcp.pop %v243
  %v248 = vmul.f32 %v239, %v247
  %v249 = vrcp.pop %v244
  %v250 = vmul.f32 %v240, %v249
  %v251 = vrcp.pop %v245
  %v252 = vmul.f32 %v241, %v251
  %v253 = vrcp.pop %v246
  %v254 = vmul.f32 %v242, %v253
  %v255 = vmul.f32 %v219, %v248
  %v256 = vmul.f32 %v220, %v250
  %v257 = vmul.f32 %v221, %v252
  %v258 = vmul.f32 %v222, %v254
  %259 = vst [vmem:[%s3] sm:$0xff] %v255
  %260 = vst [vmem:[%s3 + $0x8] sm:$0xff] %v256
  %261 = vst [vmem:[%s3 + $0x10] sm:$0xff] %v257
  %262 = vst [vmem:[%s3 + $0x18] sm:$0xff] %v258
  // Predicated region
  $region14: #{conv2d_mish_mish.1} parent=0 // pred_check
    _
  $region15: #{conv2d_mish_mish.1} parent=0 // pred_check_branch
    %264 = sbr.rel (0) target = $region17
  $region16: #{conv2d_mish_mish.1} parent=0 // pred_region
    _
  $region17: #{conv2d_mish_mish.1} parent=0 // pred_fallthru
    _
  // Predicated region
  $region18: #{conv2d_mish_mish.1} parent=0 // pred_check
    _
  $region19: #{conv2d_mish_mish.1} parent=0 // pred_check_branch
    %266 = sbr.rel (0) target = $region21
  $region20: #{conv2d_mish_mish.1} parent=0 // pred_region
    _
  $region21: #{conv2d_mish_mish.1} parent=0 // pred_fallthru
    _

</llo_original>
